<compile_context>
chip_gen: v7x
topology: tpu7x:2x2x1
jax: 0.10.0
libtpu: 0.0.40
codegen_flags: <defaults>
</compile_context>

<pallas_src>
import functools

import jax
import jax.numpy as jnp
from jax import lax
from jax.experimental import pallas as pl
from jax.experimental.pallas import tpu as pltpu

# true / padded sizes
D_IN, H1, H2, D_OUT = 413, 100, 10, 5
P_H1, P_H2, P_OUT = 128, 128, 8
BN_EPS = 1e-5

_VMEM_LIMIT = 48 * 1024 * 1024
_CP_FUSED = pltpu.CompilerParams(
    dimension_semantics=("arbitrary",), vmem_limit_bytes=_VMEM_LIMIT)
_CP_TILED = pltpu.CompilerParams(
    dimension_semantics=("parallel",), vmem_limit_bytes=_VMEM_LIMIT)


# --------------------------------------------------------------------------
# helpers
# --------------------------------------------------------------------------
def _sigmoid(x):
    return 1.0 / (1.0 + jnp.exp(-x))


def _softmax_masked(logits):
    # b3's padded lanes already hold -1e30, so plain softmax is correct.
    m = jnp.max(logits, axis=1, keepdims=True)
    e = jnp.exp(logits - m)
    return e * pl.reciprocal(jnp.sum(e, axis=1, keepdims=True))


def _masked_tile_stats(h, tb, tile_idx, real_b):
    """Per-tile (1,2,F) stats block, padded rows masked out:
       row 0 = masked column sums, row 1 = sum of squared deviations from the
       tile-local mean (M2).  Combined exactly in the wrapper (Chan)."""
    vi = jnp.maximum(jnp.minimum(real_b - tile_idx * tb, tb), 0)   # valid rows
    row = lax.broadcasted_iota(jnp.int32, (tb, 1), 0)
    valid = row < vi
    hm = jnp.where(valid, h, 0.0)
    s = jnp.sum(hm, axis=0, keepdims=True)                          # (1, F)
    mu = s / jnp.maximum(vi.astype(jnp.float32), 1.0)               # local mean
    d = jnp.where(valid, h - mu, 0.0)
    m2 = jnp.sum(d * d, axis=0, keepdims=True)                      # (1, F)
    return jnp.concatenate([s, m2], axis=0)[None]                   # (1, 2, F)


def _bn_from_tile_stats(st, counts, real_b, gamma, beta):
    """Hoisted (wrapper-side) combine of per-tile stats -> fused BN affine."""
    s = st[:, 0, :]                                                 # (nt, F)
    m2 = st[:, 1, :]
    cnt = jnp.maximum(counts, 1.0)[:, None]                         # (nt, 1)
    mu_t = s / cnt
    mu = jnp.sum(s, axis=0, keepdims=True) / real_b                 # (1, F)
    var = (jnp.sum(m2, axis=0, keepdims=True)
           + jnp.sum(counts[:, None] * (mu_t - mu) ** 2, axis=0, keepdims=True)
           ) / real_b
    var = jnp.maximum(var, 0.0)
    scale = gamma * lax.rsqrt(var + BN_EPS)
    shift = beta - mu * scale
    return scale, shift


# --------------------------------------------------------------------------
# kernels
# --------------------------------------------------------------------------
def _fused_kernel(x_ref, w1_ref, g1_ref, be1_ref, w2_ref, g2_ref, be2_ref,
                  w3_ref, b3_ref, o_ref):
    """Whole forward in one VMEM-resident kernel (exact two-pass BN stats)."""
    h1 = jnp.dot(x_ref[...], w1_ref[...], preferred_element_type=jnp.float32)
    mu1 = jnp.mean(h1, axis=0, keepdims=True)
    var1 = jnp.mean(jnp.square(h1 - mu1), axis=0, keepdims=True)
    sc1 = g1_ref[...] * lax.rsqrt(var1 + BN_EPS)
    sh1 = be1_ref[...] - mu1 * sc1
    a1 = _sigmoid(h1 * sc1 + sh1)

    h2 = jnp.dot(a1, w2_ref[...], preferred_element_type=jnp.float32)
    mu2 = jnp.mean(h2, axis=0, keepdims=True)
    var2 = jnp.mean(jnp.square(h2 - mu2), axis=0, keepdims=True)
    sc2 = g2_ref[...] * lax.rsqrt(var2 + BN_EPS)
    sh2 = be2_ref[...] - mu2 * sc2
    a2 = _sigmoid(h2 * sc2 + sh2)

    logits = jnp.dot(a2, w3_ref[...], preferred_element_type=jnp.float32) + b3_ref[...]
    o_ref[...] = _softmax_masked(logits)


def _pass1_kernel(x_ref, w1_ref, h1_ref, st1_ref, *, tb, real_b):
    i = pl.program_id(0)
    h = jnp.dot(x_ref[...], w1_ref[...], preferred_element_type=jnp.float32)
    h1_ref[...] = h
    st1_ref[...] = _masked_tile_stats(h, tb, i, real_b)


def _pass2_kernel(h1_ref, sc1_ref, sh1_ref, w2_ref, st2_ref, *, tb, real_b):
    i = pl.program_id(0)
    a1 = _sigmoid(h1_ref[...] * sc1_ref[...] + sh1_ref[...])
    h2 = jnp.dot(a1, w2_ref[...], preferred_element_type=jnp.float32)
    st2_ref[...] = _masked_tile_stats(h2, tb, i, real_b)   # h2 never hits HBM


def _pass3_kernel(h1_ref, sc1_ref, sh1_ref, w2_ref, sc2_ref, sh2_ref,
                  w3_ref, b3_ref, o_ref):
    a1 = _sigmoid(h1_ref[...] * sc1_ref[...] + sh1_ref[...])
    h2 = jnp.dot(a1, w2_ref[...], preferred_element_type=jnp.float32)  # recompute (MXU is idle)
    a2 = _sigmoid(h2 * sc2_ref[...] + sh2_ref[...])
    logits = jnp.dot(a2, w3_ref[...], preferred_element_type=jnp.float32) + b3_ref[...]
    o_ref[...] = _softmax_masked(logits)


# --------------------------------------------------------------------------
# wrapper
# --------------------------------------------------------------------------
def _full_spec(shape):
    nd = len(shape)
    return pl.BlockSpec(shape, lambda i, _nd=nd: (0,) * _nd)


def _row_spec(tb, width):
    return pl.BlockSpec((tb, width), lambda i: (i, 0))


def _stats_spec(width):
    return pl.BlockSpec((1, 2, width), lambda i: (i, 0, 0))


def _choose_tiling(B, max_tile):
    """Pad+mask tiling: pick nt >= 2 even-sized tiles of <= max_tile rows."""
    b8 = -(-B // 8) * 8
    nt = max(-(-b8 // max_tile), 2)        # >= 2 so both v7x TCs get work
    tb = -(-b8 // nt)
    tb = -(-tb // 8) * 8                   # sublane-aligned
    return tb, nt, tb * nt


def numerfical_forward(x, params, *, fuse_max_rows=4096, max_tile=4096):
    """x: (B, 413). Returns (B, 5) softmax probabilities (training-mode BN)."""
    (w1, _b1, g1, be1, w2, _b2, g2, be2, w3, b3) = params  # b1/b2 dead under BN
    B = x.shape[0]
    assert x.shape[1] == D_IN
    x = x.astype(jnp.float32)

    # ---------------- fused single-kernel path (small / medium B) ----------
    if B <= fuse_max_rows:
        out = pl.pallas_call(
            _fused_kernel,
            grid=(1,),
            in_specs=[_full_spec(x.shape), _full_spec(w1.shape),
                      _full_spec(g1.shape), _full_spec(be1.shape),
                      _full_spec(w2.shape), _full_spec(g2.shape),
                      _full_spec(be2.shape), _full_spec(w3.shape),
                      _full_spec(b3.shape)],
            out_specs=_full_spec((B, P_OUT)),
            out_shape=jax.ShapeDtypeStruct((B, P_OUT), jnp.float32),
            compiler_params=_CP_FUSED,
        )(x, w1, g1, be1, w2, g2, be2, w3, b3)
        return out[:, :D_OUT]

    # ---------------- tiled path (large B) ---------------------------------
    tb, nt, b_pad = _choose_tiling(B, max_tile)
    if b_pad != B:
        x = jnp.pad(x, ((0, b_pad - B), (0, 0)))
    counts = jnp.clip(B - jnp.arange(nt) * tb, 0, tb).astype(jnp.float32)

    # pass 1: h1 = x @ W1 + per-tile masked BN1 stats
    h1, st1 = pl.pallas_call(
        functools.partial(_pass1_kernel, tb=tb, real_b=B),
        grid=(nt,),
        in_specs=[_row_spec(tb, D_IN), _full_spec(w1.shape)],
        out_specs=(_row_spec(tb, P_H1), _stats_spec(P_H1)),
        out_shape=(jax.ShapeDtypeStruct((b_pad, P_H1), jnp.float32),
                   jax.ShapeDtypeStruct((nt, 2, P_H1), jnp.float32)),
        compiler_params=_CP_TILED,
    )(x, w1)

    sc1, sh1 = _bn_from_tile_stats(st1, counts, B, g1, be1)   # tiny XLA op

    # pass 2: BN1+sigmoid, h2 = a1 @ W2 -> only per-tile masked BN2 stats
    st2 = pl.pallas_call(
        functools.partial(_pass2_kernel, tb=tb, real_b=B),
        grid=(nt,),
        in_specs=[_row_spec(tb, P_H1), _full_spec(sc1.shape),
                  _full_spec(sh1.shape), _full_spec(w2.shape)],
        out_specs=_stats_spec(P_H2),
        out_shape=jax.ShapeDtypeStruct((nt, 2, P_H2), jnp.float32),
        compiler_params=_CP_TILED,
    )(h1, sc1, sh1, w2)

    sc2, sh2 = _bn_from_tile_stats(st2, counts, B, g2, be2)   # tiny XLA op

    # pass 3: recompute a1, h2; BN2+sigmoid; Linear(10,5)+softmax
    out = pl.pallas_call(
        _pass3_kernel,
        grid=(nt,),
        in_specs=[_row_spec(tb, P_H1), _full_spec(sc1.shape),
                  _full_spec(sh1.shape), _full_spec(w2.shape),
                  _full_spec(sc2.shape), _full_spec(sh2.shape),
                  _full_spec(w3.shape), _full_spec(b3.shape)],
        out_specs=_row_spec(tb, P_OUT),
        out_shape=jax.ShapeDtypeStruct((b_pad, P_OUT), jnp.float32),
        compiler_params=_CP_TILED,
    )(h1, sc1, sh1, w2, sc2, sh2, w3, b3)

    return out[:B, :D_OUT]


# --------------------------------------------------------------------------
# parameter init (PyTorch defaults) in padded layouts, and plain-JAX reference
# --------------------------------------------------------------------------
def init_params(key):
    ks = jax.random.split(key, 6)

    def linear(kw, kb, fan_in, fan_out, p_in, p_out):
        bound = 1.0 / jnp.sqrt(jnp.float32(fan_in))
        w = jax.random.uniform(kw, (fan_in, fan_out), jnp.float32, -bound, bound)
        b = jax.random.uniform(kb, (fan_out,), jnp.float32, -bound, bound)
        wp = jnp.zeros((p_in, p_out), jnp.float32).at[:fan_in, :fan_out].set(w)
        bp = jnp.zeros((1, p_out), jnp.float32).at[0, :fan_out].set(b)
        return wp, bp

    w1, b1 = linear(ks[0], ks[1], D_IN, H1, D_IN, P_H1)    # (413,128), (1,128)
    w2, b2 = linear(ks[2], ks[3], H1, H2, P_H1, P_H2)      # (128,128), (1,128)
    w3, b3 = linear(ks[4], ks[5], H2, D_OUT, P_H2, P_OUT)  # (128,8),   (1,8)

    # Bake the softmax lane-padding mask into b3 (kernels rely on this).
    b3 = b3.at[0, D_OUT:].set(-1e30)

    g1 = jnp.ones((1, P_H1), jnp.float32); be1 = jnp.zeros((1, P_H1), jnp.float32)
    g2 = jnp.ones((1, P_H2), jnp.float32); be2 = jnp.zeros((1, P_H2), jnp.float32)
    return (w1, b1, g1, be1, w2, b2, g2, be2, w3, b3)


def _bn_ref(h, gamma, beta):
    mu = jnp.mean(h, axis=0, keepdims=True)
    var = jnp.mean((h - mu) ** 2, axis=0, keepdims=True)   # biased, training mode
    return (h - mu) * lax.rsqrt(var + BN_EPS) * gamma + beta


def _reference(x, params):
    """Plain-JAX replica of the PyTorch forward (keeps b1/b2)."""
    (w1, b1, g1, be1, w2, b2, g2, be2, w3, b3) = params
    hp = lax.Precision.HIGHEST
    h = jnp.dot(x, w1[:, :H1], precision=hp) + b1[0, :H1]
    h = _sigmoid(_bn_ref(h, g1[0, :H1], be1[0, :H1]))
    h = jnp.dot(h, w2[:H1, :H2], precision=hp) + b2[0, :H2]
    h = _sigmoid(_bn_ref(h, g2[0, :H2], be2[0, :H2]))
    logits = jnp.dot(h, w3[:H2, :D_OUT], precision=hp) + b3[0, :D_OUT]
    return jax.nn.softmax(logits, axis=1)


if __name__ == "__main__":
    key = jax.random.PRNGKey(0)
    k_x, k_p, k_x2 = jax.random.split(key, 3)
    params = init_params(k_p)

    # --- 1) fused single-kernel path (typical small batch) ---
    B = 64
    x = jax.random.normal(k_x, (B, D_IN), jnp.float32)
    fwd = jax.jit(numerfical_forward)
    out = jax.block_until_ready(fwd(x, params))
    ref = _reference(x, params)
    assert out.shape == (B, D_OUT)
    assert jnp.allclose(jnp.sum(out, axis=1), 1.0, atol=1e-5), "softmax rows must sum to 1"
    assert jnp.allclose(out, ref, atol=2e-5, rtol=2e-5), "fused path mismatch vs reference"

    # --- 2) tiled large-batch path, exercised with tiny forced thresholds
    #        (awkward B tests the pad+mask stats and Chan's combine) ---
    B2 = 50
    x2 = jax.random.normal(k_x2, (B2, D_IN), jnp.float32)
    fwd_tiled = jax.jit(functools.partial(numerfical_forward,
                                          fuse_max_rows=16, max_tile=16))
    out2 = jax.block_until_ready(fwd_tiled(x2, params))
    ref2 = _reference(x2, params)
    assert out2.shape == (B2, D_OUT)
    assert jnp.allclose(out2, ref2, atol=2e-5, rtol=2e-5), "tiled path mismatch vs reference"

    print("KERNEL_OK")
</pallas_src>

<mosaic_0001>
module attributes {stable_mosaic.version = 11 : i64} {
  func.func @_fused_kernel(%arg0: i32, %arg1: memref<64x413xf32, #tpu.memory_space<vmem>>, %arg2: memref<413x128xf32, #tpu.memory_space<vmem>>, %arg3: memref<1x128xf32, #tpu.memory_space<vmem>>, %arg4: memref<1x128xf32, #tpu.memory_space<vmem>>, %arg5: memref<128x128xf32, #tpu.memory_space<vmem>>, %arg6: memref<1x128xf32, #tpu.memory_space<vmem>>, %arg7: memref<1x128xf32, #tpu.memory_space<vmem>>, %arg8: memref<128x8xf32, #tpu.memory_space<vmem>>, %arg9: memref<1x8xf32, #tpu.memory_space<vmem>>, %arg10: memref<64x8xf32, #tpu.memory_space<vmem>>) attributes {dimension_semantics = [#tpu.dimension_semantics<arbitrary>], iteration_bounds = array<i64: 1>, scalar_prefetch = 0 : i64, scratch_operands = 0 : i64, tpu.core_type = #tpu.core_type<tc>, window_params = [{pipeline_mode = #tpu.pipeline_mode<synchronous>, transform_indices = @transform_0, window_bounds = array<i64: 64, 413>}, {pipeline_mode = #tpu.pipeline_mode<synchronous>, transform_indices = @transform_1, window_bounds = array<i64: 413, 128>}, {pipeline_mode = #tpu.pipeline_mode<synchronous>, transform_indices = @transform_2, window_bounds = array<i64: 1, 128>}, {pipeline_mode = #tpu.pipeline_mode<synchronous>, transform_indices = @transform_3, window_bounds = array<i64: 1, 128>}, {pipeline_mode = #tpu.pipeline_mode<synchronous>, transform_indices = @transform_4, window_bounds = array<i64: 128, 128>}, {pipeline_mode = #tpu.pipeline_mode<synchronous>, transform_indices = @transform_5, window_bounds = array<i64: 1, 128>}, {pipeline_mode = #tpu.pipeline_mode<synchronous>, transform_indices = @transform_6, window_bounds = array<i64: 1, 128>}, {pipeline_mode = #tpu.pipeline_mode<synchronous>, transform_indices = @transform_7, window_bounds = array<i64: 128, 8>}, {pipeline_mode = #tpu.pipeline_mode<synchronous>, transform_indices = @transform_8, window_bounds = array<i64: 1, 8>}, {pipeline_mode = #tpu.pipeline_mode<synchronous>, transform_indices = @transform_9, window_bounds = array<i64: 64, 8>}]} {
    %c0 = arith.constant 0 : index
    %c0_0 = arith.constant 0 : index
    %0 = vector.load %arg1[%c0, %c0_0] : memref<64x413xf32, #tpu.memory_space<vmem>>, vector<64x413xf32>
    %c0_1 = arith.constant 0 : index
    %c0_2 = arith.constant 0 : index
    %1 = vector.load %arg2[%c0_1, %c0_2] : memref<413x128xf32, #tpu.memory_space<vmem>>, vector<413x128xf32>
    %cst = arith.constant dense<0.000000e+00> : vector<64x128xf32>
    %2 = tpu.matmul %0, %1, %cst {dimension_numbers = #tpu.dot_dimension_numbers<[1], [0], [0], [1], [0, 0, 1, 1], [], []>} : vector<64x413xf32>, vector<413x128xf32>, vector<64x128xf32> -> vector<64x128xf32>
    %cst_3 = arith.constant dense<0.000000e+00> : vector<128xf32>
    %3 = vector.multi_reduction <add>, %2, %cst_3 [0] : vector<64x128xf32> to vector<128xf32>
    %4 = vector.shape_cast %3 : vector<128xf32> to vector<1x128xf32>
    %cst_4 = arith.constant 6.400000e+01 : f32
    %5 = vector.broadcast %cst_4 : f32 to vector<1x128xf32>
    %6 = arith.divf %4, %5 : vector<1x128xf32>
    %7 = vector.broadcast %6 : vector<1x128xf32> to vector<64x128xf32>
    %8 = arith.subf %2, %7 : vector<64x128xf32>
    %9 = arith.mulf %8, %8 : vector<64x128xf32>
    %cst_5 = arith.constant dense<0.000000e+00> : vector<128xf32>
    %10 = vector.multi_reduction <add>, %9, %cst_5 [0] : vector<64x128xf32> to vector<128xf32>
    %11 = vector.shape_cast %10 : vector<128xf32> to vector<1x128xf32>
    %cst_6 = arith.constant 6.400000e+01 : f32
    %12 = vector.broadcast %cst_6 : f32 to vector<1x128xf32>
    %13 = arith.divf %11, %12 : vector<1x128xf32>
    %c0_7 = arith.constant 0 : index
    %c0_8 = arith.constant 0 : index
    %14 = vector.load %arg3[%c0_7, %c0_8] : memref<1x128xf32, #tpu.memory_space<vmem>>, vector<1x128xf32>
    %cst_9 = arith.constant 9.99999974E-6 : f32
    %15 = vector.broadcast %cst_9 : f32 to vector<1x128xf32>
    %16 = arith.addf %13, %15 : vector<1x128xf32>
    %17 = math.rsqrt %16 : vector<1x128xf32>
    %18 = arith.mulf %14, %17 : vector<1x128xf32>
    %c0_10 = arith.constant 0 : index
    %c0_11 = arith.constant 0 : index
    %19 = vector.load %arg4[%c0_10, %c0_11] : memref<1x128xf32, #tpu.memory_space<vmem>>, vector<1x128xf32>
    %20 = arith.mulf %6, %18 : vector<1x128xf32>
    %21 = arith.subf %19, %20 : vector<1x128xf32>
    %22 = vector.broadcast %18 : vector<1x128xf32> to vector<64x128xf32>
    %23 = arith.mulf %2, %22 : vector<64x128xf32>
    %24 = vector.broadcast %21 : vector<1x128xf32> to vector<64x128xf32>
    %25 = arith.addf %23, %24 : vector<64x128xf32>
    %cst_12 = arith.constant 0.000000e+00 : f32
    %26 = vector.broadcast %cst_12 : f32 to vector<64x128xf32>
    %27 = arith.subf %26, %25 : vector<64x128xf32>
    %28 = math.exp %27 : vector<64x128xf32>
    %cst_13 = arith.constant 1.000000e+00 : f32
    %29 = vector.broadcast %cst_13 : f32 to vector<64x128xf32>
    %30 = arith.addf %29, %28 : vector<64x128xf32>
    %cst_14 = arith.constant 1.000000e+00 : f32
    %31 = vector.broadcast %cst_14 : f32 to vector<64x128xf32>
    %32 = arith.divf %31, %30 : vector<64x128xf32>
    %c0_15 = arith.constant 0 : index
    %c0_16 = arith.constant 0 : index
    %33 = vector.load %arg5[%c0_15, %c0_16] : memref<128x128xf32, #tpu.memory_space<vmem>>, vector<128x128xf32>
    %cst_17 = arith.constant dense<0.000000e+00> : vector<64x128xf32>
    %34 = tpu.matmul %32, %33, %cst_17 {dimension_numbers = #tpu.dot_dimension_numbers<[1], [0], [0], [1], [0, 0, 1, 1], [], []>} : vector<64x128xf32>, vector<128x128xf32>, vector<64x128xf32> -> vector<64x128xf32>
    %cst_18 = arith.constant dense<0.000000e+00> : vector<128xf32>
    %35 = vector.multi_reduction <add>, %34, %cst_18 [0] : vector<64x128xf32> to vector<128xf32>
    %36 = vector.shape_cast %35 : vector<128xf32> to vector<1x128xf32>
    %cst_19 = arith.constant 6.400000e+01 : f32
    %37 = vector.broadcast %cst_19 : f32 to vector<1x128xf32>
    %38 = arith.divf %36, %37 : vector<1x128xf32>
    %39 = vector.broadcast %38 : vector<1x128xf32> to vector<64x128xf32>
    %40 = arith.subf %34, %39 : vector<64x128xf32>
    %41 = arith.mulf %40, %40 : vector<64x128xf32>
    %cst_20 = arith.constant dense<0.000000e+00> : vector<128xf32>
    %42 = vector.multi_reduction <add>, %41, %cst_20 [0] : vector<64x128xf32> to vector<128xf32>
    %43 = vector.shape_cast %42 : vector<128xf32> to vector<1x128xf32>
    %cst_21 = arith.constant 6.400000e+01 : f32
    %44 = vector.broadcast %cst_21 : f32 to vector<1x128xf32>
    %45 = arith.divf %43, %44 : vector<1x128xf32>
    %c0_22 = arith.constant 0 : index
    %c0_23 = arith.constant 0 : index
    %46 = vector.load %arg6[%c0_22, %c0_23] : memref<1x128xf32, #tpu.memory_space<vmem>>, vector<1x128xf32>
    %cst_24 = arith.constant 9.99999974E-6 : f32
    %47 = vector.broadcast %cst_24 : f32 to vector<1x128xf32>
    %48 = arith.addf %45, %47 : vector<1x128xf32>
    %49 = math.rsqrt %48 : vector<1x128xf32>
    %50 = arith.mulf %46, %49 : vector<1x128xf32>
    %c0_25 = arith.constant 0 : index
    %c0_26 = arith.constant 0 : index
    %51 = vector.load %arg7[%c0_25, %c0_26] : memref<1x128xf32, #tpu.memory_space<vmem>>, vector<1x128xf32>
    %52 = arith.mulf %38, %50 : vector<1x128xf32>
    %53 = arith.subf %51, %52 : vector<1x128xf32>
    %54 = vector.broadcast %50 : vector<1x128xf32> to vector<64x128xf32>
    %55 = arith.mulf %34, %54 : vector<64x128xf32>
    %56 = vector.broadcast %53 : vector<1x128xf32> to vector<64x128xf32>
    %57 = arith.addf %55, %56 : vector<64x128xf32>
    %cst_27 = arith.constant 0.000000e+00 : f32
    %58 = vector.broadcast %cst_27 : f32 to vector<64x128xf32>
    %59 = arith.subf %58, %57 : vector<64x128xf32>
    %60 = math.exp %59 : vector<64x128xf32>
    %cst_28 = arith.constant 1.000000e+00 : f32
    %61 = vector.broadcast %cst_28 : f32 to vector<64x128xf32>
    %62 = arith.addf %61, %60 : vector<64x128xf32>
    %cst_29 = arith.constant 1.000000e+00 : f32
    %63 = vector.broadcast %cst_29 : f32 to vector<64x128xf32>
    %64 = arith.divf %63, %62 : vector<64x128xf32>
    %c0_30 = arith.constant 0 : index
    %c0_31 = arith.constant 0 : index
    %65 = vector.load %arg8[%c0_30, %c0_31] : memref<128x8xf32, #tpu.memory_space<vmem>>, vector<128x8xf32>
    %cst_32 = arith.constant dense<0.000000e+00> : vector<64x8xf32>
    %66 = tpu.matmul %64, %65, %cst_32 {dimension_numbers = #tpu.dot_dimension_numbers<[1], [0], [0], [1], [0, 0, 1, 1], [], []>} : vector<64x128xf32>, vector<128x8xf32>, vector<64x8xf32> -> vector<64x8xf32>
    %c0_33 = arith.constant 0 : index
    %c0_34 = arith.constant 0 : index
    %67 = vector.load %arg9[%c0_33, %c0_34] : memref<1x8xf32, #tpu.memory_space<vmem>>, vector<1x8xf32>
    %68 = vector.broadcast %67 : vector<1x8xf32> to vector<64x8xf32>
    %69 = arith.addf %66, %68 : vector<64x8xf32>
    %cst_35 = arith.constant dense<0xFF800000> : vector<64xf32>
    %70 = vector.multi_reduction <maximumf>, %69, %cst_35 [1] : vector<64x8xf32> to vector<64xf32>
    %71 = vector.shape_cast %70 : vector<64xf32> to vector<64x1xf32>
    %72 = vector.broadcast %71 : vector<64x1xf32> to vector<64x8xf32>
    %73 = arith.subf %69, %72 : vector<64x8xf32>
    %74 = math.exp %73 : vector<64x8xf32>
    %cst_36 = arith.constant dense<0.000000e+00> : vector<64xf32>
    %75 = vector.multi_reduction <add>, %74, %cst_36 [1] : vector<64x8xf32> to vector<64xf32>
    %76 = vector.shape_cast %75 : vector<64xf32> to vector<64x1xf32>
    %77 = tpu.reciprocal %76 : vector<64x1xf32> -> vector<64x1xf32>
    %78 = vector.broadcast %77 : vector<64x1xf32> to vector<64x8xf32>
    %79 = arith.mulf %74, %78 : vector<64x8xf32>
    %c0_37 = arith.constant 0 : index
    %c0_38 = arith.constant 0 : index
    %80 = vector.load %arg10[%c0_37, %c0_38] : memref<64x8xf32, #tpu.memory_space<vmem>>, vector<64x8xf32>
    tpu.vector_store %arg10[%c0_37, %c0_38], %79 {strides = array<i32>} : memref<64x8xf32, #tpu.memory_space<vmem>>, vector<64x8xf32>,
    return
  }
  func.func @transform_0(%arg0: i32) -> (i32, i32) {
    %c0_i32 = arith.constant 0 : i32
    %c0_i32_0 = arith.constant 0 : i32
    %c0_i32_1 = arith.constant 0 : i32
    return %c0_i32, %c0_i32_0 : i32, i32
  }
  func.func @transform_1(%arg0: i32) -> (i32, i32) {
    %c0_i32 = arith.constant 0 : i32
    %c0_i32_0 = arith.constant 0 : i32
    %c0_i32_1 = arith.constant 0 : i32
    return %c0_i32, %c0_i32_0 : i32, i32
  }
  func.func @transform_2(%arg0: i32) -> (i32, i32) {
    %c0_i32 = arith.constant 0 : i32
    %c0_i32_0 = arith.constant 0 : i32
    %c0_i32_1 = arith.constant 0 : i32
    return %c0_i32, %c0_i32_0 : i32, i32
  }
  func.func @transform_3(%arg0: i32) -> (i32, i32) {
    %c0_i32 = arith.constant 0 : i32
    %c0_i32_0 = arith.constant 0 : i32
    %c0_i32_1 = arith.constant 0 : i32
    return %c0_i32, %c0_i32_0 : i32, i32
  }
  func.func @transform_4(%arg0: i32) -> (i32, i32) {
    %c0_i32 = arith.constant 0 : i32
    %c0_i32_0 = arith.constant 0 : i32
    %c0_i32_1 = arith.constant 0 : i32
    return %c0_i32, %c0_i32_0 : i32, i32
  }
  func.func @transform_5(%arg0: i32) -> (i32, i32) {
    %c0_i32 = arith.constant 0 : i32
    %c0_i32_0 = arith.constant 0 : i32
    %c0_i32_1 = arith.constant 0 : i32
    return %c0_i32, %c0_i32_0 : i32, i32
  }
  func.func @transform_6(%arg0: i32) -> (i32, i32) {
    %c0_i32 = arith.constant 0 : i32
    %c0_i32_0 = arith.constant 0 : i32
    %c0_i32_1 = arith.constant 0 : i32
    return %c0_i32, %c0_i32_0 : i32, i32
  }
  func.func @transform_7(%arg0: i32) -> (i32, i32) {
    %c0_i32 = arith.constant 0 : i32
    %c0_i32_0 = arith.constant 0 : i32
    %c0_i32_1 = arith.constant 0 : i32
    return %c0_i32, %c0_i32_0 : i32, i32
  }
  func.func @transform_8(%arg0: i32) -> (i32, i32) {
    %c0_i32 = arith.constant 0 : i32
    %c0_i32_0 = arith.constant 0 : i32
    %c0_i32_1 = arith.constant 0 : i32
    return %c0_i32, %c0_i32_0 : i32, i32
  }
  func.func @transform_9(%arg0: i32) -> (i32, i32) {
    %c0_i32 = arith.constant 0 : i32
    %c0_i32_0 = arith.constant 0 : i32
    %c0_i32_1 = arith.constant 0 : i32
    return %c0_i32, %c0_i32_0 : i32, i32
  }
}

</mosaic_0001>

<llo_original>
// kernel: numerfical_forward.1
$region0: #{numerfical_forward.1}
  #allocation0 [shape = 'u32[]', space=smem, size = 0x4, offset = 0x4, fixed_abs, tag = 'smem constant byte address 0x4 - core index']
  #allocation1 [shape = 'u32[144,128]{1,0:T(1,128)}', space=vmem, size = 0x12000, scoped, tag = 'internal scratch']
  %s0 = inlined_call_operand.hbm [shape: f32[64,413], index: 0, kind: input, shape index: {}]
  %s1 = inlined_call_operand.hbm [shape: f32[413,128], index: 1, kind: input, shape index: {}]
  %s2 = inlined_call_operand.vmem [shape: f32[1,128], index: 2, kind: input, shape index: {}]
  %s3 = inlined_call_operand.vmem [shape: f32[1,128], index: 3, kind: input, shape index: {}]
  %s4 = inlined_call_operand.vmem [shape: f32[128,128], index: 4, kind: input, shape index: {}]
  %s5 = inlined_call_operand.vmem [shape: f32[1,128], index: 5, kind: input, shape index: {}]
  %s6 = inlined_call_operand.vmem [shape: f32[1,128], index: 6, kind: input, shape index: {}]
  %s7 = inlined_call_operand.vmem [shape: f32[128,8], index: 7, kind: input, shape index: {}]
  %s8 = inlined_call_operand.vmem [shape: f32[1,8], index: 8, kind: input, shape index: {}]
  %s9 = inlined_call_operand.vmem [shape: f32[64,8], index: 9, kind: output, shape index: {}]
  %s10 = sld [smem:[#allocation0]]
  $region54: #{numerfical_forward.1} parent=0
    _
  %s12 = ssub.s32 1, %s10
  %s13 = scalar_select 0, %s12, %s10
  $region1: #{numerfical_forward.1} parent=0
    #allocation2 [shape = 'u8[131072]{0}', space=vmem, size = 0x20000, scoped, tag = 'input window, operand 0, single buffered']
    #allocation3 [shape = 's32[1]{0}', space=sflag, size = 0x4, scoped, tag = 'scoped memory for numerfical_forward.1']
    #allocation4 [shape = 'u8[212992]{0}', space=vmem, size = 0x34000, scoped, tag = 'input window, operand 1, single buffered']
    #allocation5 [shape = 's32[1]{0}', space=sflag, size = 0x4, scoped, tag = 'scoped memory for numerfical_forward.1']
    %14 = vsyncpa [#allocation3], 0
    %15 = vsyncpa [#allocation5], 0
    // Predicated region
    $region2: #{numerfical_forward.1} parent=1 // pred_check
      _
    $region3: #{numerfical_forward.1} parent=1 // pred_check_branch
      %17 = sbr.rel (0) target = $region5
    $region4: #{numerfical_forward.1} parent=1 // pred_region
      %s19 = ssub.s32 4096, 4096
      %20 = vsyncadd [#allocation3], %s19
      %s21 = sshll.u32 [#allocation2], 4
      %s22 = int_to_ptr.vmem [resolvable:$true] %s21
      %27 = dma.hbm_to_vmem [thread:$0]  %s0, 4096, %s22, [#allocation3], 512, 512, 32
    $region5: #{numerfical_forward.1} parent=1 // pred_fallthru
      _
    // Predicated region
    $region6: #{numerfical_forward.1} parent=1 // pred_check
      _
    $region7: #{numerfical_forward.1} parent=1 // pred_check_branch
      %29 = sbr.rel (0) target = $region9
    $region8: #{numerfical_forward.1} parent=1 // pred_region
      %s31 = ssub.s32 6656, 6656
      %32 = vsyncadd [#allocation5], %s31
      %s33 = sshll.u32 [#allocation4], 4
      %s34 = int_to_ptr.vmem [resolvable:$true] %s33
      %39 = dma.hbm_to_vmem [thread:$0]  %s1, 6656, %s34, [#allocation5], 128, 128, 8
    $region9: #{numerfical_forward.1} parent=1 // pred_fallthru
      _
    // Predicated region
    $region10: #{numerfical_forward.1} parent=1 // pred_check
      _
    $region11: #{numerfical_forward.1} parent=1 // pred_check_branch
      %41 = sbr.rel (0) target = $region13
    $region12: #{numerfical_forward.1} parent=1 // pred_region
      _
    $region13: #{numerfical_forward.1} parent=1 // pred_fallthru
      _
    // Predicated region
    $region14: #{numerfical_forward.1} parent=1 // pred_check
      _
    $region15: #{numerfical_forward.1} parent=1 // pred_check_branch
      %43 = sbr.rel (0) target = $region17
    $region16: #{numerfical_forward.1} parent=1 // pred_region
      _
    $region17: #{numerfical_forward.1} parent=1 // pred_fallthru
      _
    // Predicated region
    $region18: #{numerfical_forward.1} parent=1 // pred_check
      _
    $region19: #{numerfical_forward.1} parent=1 // pred_check_branch
      %45 = sbr.rel (0) target = $region21
    $region20: #{numerfical_forward.1} parent=1 // pred_region
      _
    $region21: #{numerfical_forward.1} parent=1 // pred_fallthru
      _
    // Predicated region
    $region22: #{numerfical_forward.1} parent=1 // pred_check
      _
    $region23: #{numerfical_forward.1} parent=1 // pred_check_branch
      %47 = sbr.rel (0) target = $region25
    $region24: #{numerfical_forward.1} parent=1 // pred_region
      _
    $region25: #{numerfical_forward.1} parent=1 // pred_fallthru
      _
    // Predicated region
    $region26: #{numerfical_forward.1} parent=1 // pred_check
      _
    $region27: #{numerfical_forward.1} parent=1 // pred_check_branch
      %49 = sbr.rel (0) target = $region29
    $region28: #{numerfical_forward.1} parent=1 // pred_region
      _
    $region29: #{numerfical_forward.1} parent=1 // pred_fallthru
      _
    // Predicated region
    $region30: #{numerfical_forward.1} parent=1 // pred_check
      _
    $region31: #{numerfical_forward.1} parent=1 // pred_check_branch
      %51 = sbr.rel (0) target = $region33
    $region32: #{numerfical_forward.1} parent=1 // pred_region
      _
    $region33: #{numerfical_forward.1} parent=1 // pred_fallthru
      _
    // Predicated region
    $region34: #{numerfical_forward.1} parent=1 // pred_check
      _
    $region35: #{numerfical_forward.1} parent=1 // pred_check_branch
      %53 = sbr.rel (0) target = $region37
    $region36: #{numerfical_forward.1} parent=1 // pred_region
      _
    $region37: #{numerfical_forward.1} parent=1 // pred_fallthru
      _
    // Predicated region
    $region38: #{numerfical_forward.1} parent=1 // pred_check
      _
    $region39: #{numerfical_forward.1} parent=1 // pred_check_branch
      %55 = sbr.rel (0) target = $region41
    $region40: #{numerfical_forward.1} parent=1 // pred_region
      %56 = dma.done [#allocation3], 4096
    $region41: #{numerfical_forward.1} parent=1 // pred_fallthru
      _
    // Predicated region
    $region42: #{numerfical_forward.1} parent=1 // pred_check
      _
    $region43: #{numerfical_forward.1} parent=1 // pred_check_branch
      %58 = sbr.rel (0) target = $region45
    $region44: #{numerfical_forward.1} parent=1 // pred_region
      %59 = dma.done [#allocation5], 6656
    $region45: #{numerfical_forward.1} parent=1 // pred_fallthru
      _
    %v60 = vld [vmem:[#allocation2] sm:$0xff]
    %v61 = vld [vmem:[#allocation2 + $0x8] sm:$0xff]
    %v62 = vld [vmem:[#allocation2 + $0x10] sm:$0xff]
    %v63 = vld [vmem:[#allocation2 + $0x18] sm:$0xff]
    %v64 = vld [vmem:[#allocation2 + $0x20] sm:$0xff]
    %v65 = vld [vmem:[#allocation2 + $0x28] sm:$0xff]
    %v66 = vld [vmem:[#allocation2 + $0x30] sm:$0xff]
    %v67 = vld [vmem:[#allocation2 + $0x38] sm:$0xff]
    %v68 = vld [vmem:[#allocation2 + $0x40] sm:$0xff]
    %v69 = vld [vmem:[#allocation2 + $0x48] sm:$0xff]
    %v70 = vld [vmem:[#allocation2 + $0x50] sm:$0xff]
    %v71 = vld [vmem:[#allocation2 + $0x58] sm:$0xff]
    %v72 = vld [vmem:[#allocation2 + $0x60] sm:$0xff]
    %v73 = vld [vmem:[#allocation2 + $0x68] sm:$0xff]
    %v74 = vld [vmem:[#allocation2 + $0x70] sm:$0xff]
    %v75 = vld [vmem:[#allocation2 + $0x78] sm:$0xff]
    %v76 = vld [vmem:[#allocation2 + $0x80] sm:$0xff]
    %v77 = vld [vmem:[#allocation2 + $0x88] sm:$0xff]
    %v78 = vld [vmem:[#allocation2 + $0x90] sm:$0xff]
    %v79 = vld [vmem:[#allocation2 + $0x98] sm:$0xff]
    %v80 = vld [vmem:[#allocation2 + $0xa0] sm:$0xff]
    %v81 = vld [vmem:[#allocation2 + $0xa8] sm:$0xff]
    %v82 = vld [vmem:[#allocation2 + $0xb0] sm:$0xff]
    %v83 = vld [vmem:[#allocation2 + $0xb8] sm:$0xff]
    %v84 = vld [vmem:[#allocation2 + $0xc0] sm:$0xff]
    %v85 = vld [vmem:[#allocation2 + $0xc8] sm:$0xff]
    %v86 = vld [vmem:[#allocation2 + $0xd0] sm:$0xff]
    %v87 = vld [vmem:[#allocation2 + $0xd8] sm:$0xff]
    %v88 = vld [vmem:[#allocation2 + $0xe0] sm:$0xff]
    %v89 = vld [vmem:[#allocation2 + $0xe8] sm:$0xff]
    %v90 = vld [vmem:[#allocation2 + $0xf0] sm:$0xff]
    %v91 = vld [vmem:[#allocation2 + $0xf8] sm:$0xff]
    %v92 = vld [vmem:[#allocation4] sm:$0xff]
    %v93 = vld [vmem:[#allocation4 + $0x8] sm:$0xff]
    %v94 = vld [vmem:[#allocation4 + $0x10] sm:$0xff]
    %v95 = vld [vmem:[#allocation4 + $0x18] sm:$0xff]
    %v96 = vld [vmem:[#allocation4 + $0x20] sm:$0xff]
    %v97 = vld [vmem:[#allocation4 + $0x28] sm:$0xff]
    %v98 = vld [vmem:[#allocation4 + $0x30] sm:$0xff]
    %v99 = vld [vmem:[#allocation4 + $0x38] sm:$0xff]
    %v100 = vld [vmem:[#allocation4 + $0x40] sm:$0xff]
    %v101 = vld [vmem:[#allocation4 + $0x48] sm:$0xff]
    %v102 = vld [vmem:[#allocation4 + $0x50] sm:$0xff]
    %v103 = vld [vmem:[#allocation4 + $0x58] sm:$0xff]
    %v104 = vld [vmem:[#allocation4 + $0x60] sm:$0xff]
    %v105 = vld [vmem:[#allocation4 + $0x68] sm:$0xff]
    %v106 = vld [vmem:[#allocation4 + $0x70] sm:$0xff]
    %v107 = vld [vmem:[#allocation4 + $0x78] sm:$0xff]
    %v108 = vld [vmem:[#allocation4 + $0x80] sm:$0xff]
    %v109 = vld [vmem:[#allocation4 + $0x88] sm:$0xff]
    %v110 = vld [vmem:[#allocation4 + $0x90] sm:$0xff]
    %v111 = vld [vmem:[#allocation4 + $0x98] sm:$0xff]
    %v112 = vld [vmem:[#allocation4 + $0xa0] sm:$0xff]
    %v113 = vld [vmem:[#allocation4 + $0xa8] sm:$0xff]
    %v114 = vld [vmem:[#allocation4 + $0xb0] sm:$0xff]
    %v115 = vld [vmem:[#allocation4 + $0xb8] sm:$0xff]
    %v116 = vld [vmem:[#allocation4 + $0xc0] sm:$0xff]
    %v117 = vld [vmem:[#allocation4 + $0xc8] sm:$0xff]
    %v118 = vld [vmem:[#allocation4 + $0xd0] sm:$0xff]
    %v119 = vld [vmem:[#allocation4 + $0xd8] sm:$0xff]
    %v120 = vld [vmem:[#allocation4 + $0xe0] sm:$0xff]
    %v121 = vld [vmem:[#allocation4 + $0xe8] sm:$0xff]
    %v122 = vld [vmem:[#allocation4 + $0xf0] sm:$0xff]
    %v123 = vld [vmem:[#allocation4 + $0xf8] sm:$0xff]
    %v124 = vld [vmem:[#allocation4 + $0x100] sm:$0xff]
    %v125 = vld [vmem:[#allocation4 + $0x108] sm:$0xff]
    %v126 = vld [vmem:[#allocation4 + $0x110] sm:$0xff]
    %v127 = vld [vmem:[#allocation4 + $0x118] sm:$0xff]
    %v128 = vld [vmem:[#allocation4 + $0x120] sm:$0xff]
    %v129 = vld [vmem:[#allocation4 + $0x128] sm:$0xff]
    %v130 = vld [vmem:[#allocation4 + $0x130] sm:$0xff]
    %v131 = vld [vmem:[#allocation4 + $0x138] sm:$0xff]
    %v132 = vld [vmem:[#allocation4 + $0x140] sm:$0xff]
    %v133 = vld [vmem:[#allocation4 + $0x148] sm:$0xff]
    %v134 = vld [vmem:[#allocation4 + $0x150] sm:$0xff]
    %v135 = vld [vmem:[#allocation4 + $0x158] sm:$0xff]
    %v136 = vld [vmem:[#allocation4 + $0x160] sm:$0xff]
    %v137 = vld [vmem:[#allocation4 + $0x168] sm:$0xff]
    %v138 = vld [vmem:[#allocation4 + $0x170] sm:$0xff]
    %v139 = vld [vmem:[#allocation4 + $0x178] sm:$0xff]
    %v140 = vld [vmem:[#allocation4 + $0x180] sm:$0xff]
    %v141 = vld [vmem:[#allocation4 + $0x188] sm:$0xff]
    %v142 = vld [vmem:[#allocation4 + $0x190] sm:$0xff]
    %v143 = vld [vmem:[#allocation4 + $0x198] sm:$0x1f]
    %vm144 = vcmask 236544
    %v146 = vsel %vm144, %v63, 0
    %v149 = vsel %vm144, %v67, 0
    %v152 = vsel %vm144, %v71, 0
    %v155 = vsel %vm144, %v75, 0
    %v158 = vsel %vm144, %v79, 0
    %v161 = vsel %vm144, %v83, 0
    %v164 = vsel %vm144, %v87, 0
    %v167 = vsel %vm144, %v91, 0
    %vm169 = vcmask 1044480
    %v171 = vsel %vm169, %v143, 0
    %173 = vmatprep.subr.mxu0 0.0
    %174 = vmatpush1.msra.mxu0 %v92
    %175 = vmatprep.subr.mxu0 0.0
    %176 = vmatpush1.msra.mxu0 %v93
    %177 = vmatprep.subr.mxu0 0.0
    %178 = vmatpush1.msra.mxu0 %v94
    %179 = vmatprep.subr.mxu0 0.0
    %180 = vmatpush1.msra.mxu0 %v95
    %181 = vmatprep.subr.mxu0 0.0
    %182 = vmatpush1.msra.mxu0 %v96
    %183 = vmatprep.subr.mxu0 0.0
    %184 = vmatpush1.msra.mxu0 %v97
    %185 = vmatprep.subr.mxu0 0.0
    %186 = vmatpush1.msra.mxu0 %v98
    %187 = vmatprep.subr.mxu0 0.0
    %188 = vmatpush1.msra.mxu0 %v99
    %189 = vmatprep.subr.mxu0 0.0
    %190 = vmatpush1.msra.mxu0 %v100
    %191 = vmatprep.subr.mxu0 0.0
    %192 = vmatpush1.msra.mxu0 %v101
    %193 = vmatprep.subr.mxu0 0.0
    %194 = vmatpush1.msra.mxu0 %v102
    %195 = vmatprep.subr.mxu0 0.0
    %196 = vmatpush1.msra.mxu0 %v103
    %197 = vmatprep.subr.mxu0 0.0
    %198 = vmatpush1.msra.mxu0 %v104
    %199 = vmatprep.subr.mxu0 0.0
    %200 = vmatpush1.msra.mxu0 %v105
    %201 = vmatprep.subr.mxu0 0.0
    %202 = vmatpush1.msra.mxu0 %v106
    %203 = vmatprep.subr.mxu0 0.0
    %204 = vmatpush1.msra.mxu0 %v107
    %205 = vmatprep.subr.mxu0 0.0
    %206 = vmatpush1.msra.mxu0 %v108
    %207 = vmatprep.subr.mxu0 0.0
    %208 = vmatpush1.msra.mxu0 %v109
    %209 = vmatprep.subr.mxu0 0.0
    %210 = vmatpush1.msra.mxu0 %v110
    %211 = vmatprep.subr.mxu0 0.0
    %212 = vmatpush1.msra.mxu0 %v111
    %213 = vmatprep.subr.mxu0 0.0
    %214 = vmatpush1.msra.mxu0 %v112
    %215 = vmatprep.subr.mxu0 0.0
    %216 = vmatpush1.msra.mxu0 %v113
    %217 = vmatprep.subr.mxu0 0.0
    %218 = vmatpush1.msra.mxu0 %v114
    %219 = vmatprep.subr.mxu0 0.0
    %220 = vmatpush1.msra.mxu0 %v115
    %221 = vmatprep.subr.mxu0 0.0
    %222 = vmatpush1.msra.mxu0 %v116
    %223 = vmatprep.subr.mxu0 0.0
    %224 = vmatpush1.msra.mxu0 %v117
    %225 = vmatprep.subr.mxu0 0.0
    %226 = vmatpush1.msra.mxu0 %v118
    %227 = vmatprep.subr.mxu0 0.0
    %228 = vmatpush1.msra.mxu0 %v119
    %229 = vmatprep.subr.mxu0 0.0
    %230 = vmatpush1.msra.mxu0 %v120
    %231 = vmatprep.subr.mxu0 0.0
    %232 = vmatpush1.msra.mxu0 %v121
    %233 = vmatprep.subr.mxu0 0.0
    %234 = vmatpush1.msra.mxu0 %v122
    %235 = vmatprep.subr.mxu0 0.0
    %236 = vmatpush1.msra.mxu0 %v123
    %237 = vmatprep.mubr.f32.mxu0 %v61
    %238 = vmatmul.mubr.f32.gmra.mrb[0].mxu0 %v60
    %v239 = vpop.f32.mrb[0].mxu0
    %v240 = vadd.f32 0.0, %v239
    %v241 = vpop.f32.mrb[0].mxu0
    %242 = vmatprep.mubr.f32.mxu0 %v65
    %243 = vmatmul.mubr.f32.gmra.mrb[0].mxu0 %v64
    %v244 = vpop.f32.mrb[0].mxu0
    %v245 = vadd.f32 0.0, %v244
    %v246 = vpop.f32.mrb[0].mxu0
    %247 = vmatprep.mubr.f32.mxu0 %v69
    %248 = vmatmul.mubr.f32.gmra.mrb[0].mxu0 %v68
    %v249 = vpop.f32.mrb[0].mxu0
    %v250 = vadd.f32 0.0, %v249
    %v251 = vpop.f32.mrb[0].mxu0
    %252 = vmatprep.mubr.f32.mxu0 %v73
    %253 = vmatmul.mubr.f32.gmra.mrb[0].mxu0 %v72
    %v254 = vpop.f32.mrb[0].mxu0
    %v255 = vadd.f32 0.0, %v254
    %v256 = vpop.f32.mrb[0].mxu0
    %257 = vmatprep.mubr.f32.mxu0 %v77
    %258 = vmatmul.mubr.f32.gmra.mrb[0].mxu0 %v76
    %v259 = vpop.f32.mrb[0].mxu0
    %v260 = vadd.f32 0.0, %v259
    %v261 = vpop.f32.mrb[0].mxu0
    %262 = vmatprep.mubr.f32.mxu0 %v81
    %263 = vmatmul.mubr.f32.gmra.mrb[0].mxu0 %v80
    %v264 = vpop.f32.mrb[0].mxu0
    %v265 = vadd.f32 0.0, %v264
    %v266 = vpop.f32.mrb[0].mxu0
    %267 = vmatprep.mubr.f32.mxu0 %v85
    %268 = vmatmul.mubr.f32.gmra.mrb[0].mxu0 %v84
    %v269 = vpop.f32.mrb[0].mxu0
    %v270 = vadd.f32 0.0, %v269
    %v271 = vpop.f32.mrb[0].mxu0
    %272 = vmatprep.mubr.f32.mxu0 %v89
    %273 = vmatmul.mubr.f32.gmra.mrb[0].mxu0 %v88
    %v274 = vpop.f32.mrb[0].mxu0
    %v275 = vadd.f32 0.0, %v274
    %v276 = vpop.f32.mrb[0].mxu0
    %277 = vdwg.mxu0
    %278 = vmatprep.subr.mxu0 0.0
    %279 = vmatpush1.msra.mxu0 %v124
    %280 = vmatprep.subr.mxu0 0.0
    %281 = vmatpush1.msra.mxu0 %v125
    %282 = vmatprep.subr.mxu0 0.0
    %283 = vmatpush1.msra.mxu0 %v126
    %284 = vmatprep.subr.mxu0 0.0
    %285 = vmatpush1.msra.mxu0 %v127
    %286 = vmatprep.subr.mxu0 0.0
    %287 = vmatpush1.msra.mxu0 %v128
    %288 = vmatprep.subr.mxu0 0.0
    %289 = vmatpush1.msra.mxu0 %v129
    %290 = vmatprep.subr.mxu0 0.0
    %291 = vmatpush1.msra.mxu0 %v130
    %292 = vmatprep.subr.mxu0 0.0
    %293 = vmatpush1.msra.mxu0 %v131
    %294 = vmatprep.subr.mxu0 0.0
    %295 = vmatpush1.msra.mxu0 %v132
    %296 = vmatprep.subr.mxu0 0.0
    %297 = vmatpush1.msra.mxu0 %v133
    %298 = vmatprep.subr.mxu0 0.0
    %299 = vmatpush1.msra.mxu0 %v134
    %300 = vmatprep.subr.mxu0 0.0
    %301 = vmatpush1.msra.mxu0 %v135
    %302 = vmatprep.subr.mxu0 0.0
    %303 = vmatpush1.msra.mxu0 %v136
    %304 = vmatprep.subr.mxu0 0.0
    %305 = vmatpush1.msra.mxu0 %v137
    %306 = vmatprep.subr.mxu0 0.0
    %307 = vmatpush1.msra.mxu0 %v138
    %308 = vmatprep.subr.mxu0 0.0
    %309 = vmatpush1.msra.mxu0 %v139
    %310 = vmatprep.subr.mxu0 0.0
    %311 = vmatpush1.msra.mxu0 %v140
    %312 = vmatprep.subr.mxu0 0.0
    %313 = vmatpush1.msra.mxu0 %v141
    %314 = vmatprep.subr.mxu0 0.0
    %315 = vmatpush1.msra.mxu0 %v142
    %316 = vmatprep.subr.mxu0 0.0
    %317 = vmatpush1.msra.mxu0 %v171
    %318 = vmatprep.subr.mxu0 0.0
    %319 = vmatpush1.msra.mxu0 0.0
    %320 = vmatprep.subr.mxu0 0.0
    %321 = vmatpush1.msra.mxu0 0.0
    %322 = vmatprep.subr.mxu0 0.0
    %323 = vmatpush1.msra.mxu0 0.0
    %324 = vmatprep.subr.mxu0 0.0
    %325 = vmatpush1.msra.mxu0 0.0
    %326 = vmatprep.subr.mxu0 0.0
    %327 = vmatpush1.msra.mxu0 0.0
    %328 = vmatprep.subr.mxu0 0.0
    %329 = vmatpush1.msra.mxu0 0.0
    %330 = vmatprep.subr.mxu0 0.0
    %331 = vmatpush1.msra.mxu0 0.0
    %332 = vmatprep.subr.mxu0 0.0
    %333 = vmatpush1.msra.mxu0 0.0
    %334 = vmatprep.subr.mxu0 0.0
    %335 = vmatpush1.msra.mxu0 0.0
    %336 = vmatprep.subr.mxu0 0.0
    %337 = vmatpush1.msra.mxu0 0.0
    %338 = vmatprep.subr.mxu0 0.0
    %339 = vmatpush1.msra.mxu0 0.0
    %340 = vmatprep.subr.mxu0 0.0
    %341 = vmatpush1.msra.mxu0 0.0
    %342 = vmatprep.mubr.f32.mxu0 %v146
    %343 = vmatmul.mubr.f32.gmra.mrb[0].mxu0 %v62
    %v344 = vpop.f32.mrb[0].mxu0
    %v345 = vadd.f32 %v240, %v344
    %v346 = vpop.f32.mrb[0].mxu0
    %347 = vmatprep.mubr.f32.mxu0 %v149
    %348 = vmatmul.mubr.f32.gmra.mrb[0].mxu0 %v66
    %v349 = vpop.f32.mrb[0].mxu0
    %v350 = vadd.f32 %v245, %v349
    %v351 = vpop.f32.mrb[0].mxu0
    %352 = vmatprep.mubr.f32.mxu0 %v152
    %353 = vmatmul.mubr.f32.gmra.mrb[0].mxu0 %v70
    %v354 = vpop.f32.mrb[0].mxu0
    %v355 = vadd.f32 %v250, %v354
    %v356 = vpop.f32.mrb[0].mxu0
    %357 = vmatprep.mubr.f32.mxu0 %v155
    %358 = vmatmul.mubr.f32.gmra.mrb[0].mxu0 %v74
    %v359 = vpop.f32.mrb[0].mxu0
    %v360 = vadd.f32 %v255, %v359
    %v361 = vpop.f32.mrb[0].mxu0
    %362 = vmatprep.mubr.f32.mxu0 %v158
    %363 = vmatmul.mubr.f32.gmra.mrb[0].mxu0 %v78
    %v364 = vpop.f32.mrb[0].mxu0
    %v365 = vadd.f32 %v260, %v364
    %v366 = vpop.f32.mrb[0].mxu0
    %367 = vmatprep.mubr.f32.mxu0 %v161
    %368 = vmatmul.mubr.f32.gmra.mrb[0].mxu0 %v82
    %v369 = vpop.f32.mrb[0].mxu0
    %v370 = vadd.f32 %v265, %v369
    %v371 = vpop.f32.mrb[0].mxu0
    %372 = vmatprep.mubr.f32.mxu0 %v164
    %373 = vmatmul.mubr.f32.gmra.mrb[0].mxu0 %v86
    %v374 = vpop.f32.mrb[0].mxu0
    %v375 = vadd.f32 %v270, %v374
    %v376 = vpop.f32.mrb[0].mxu0
    %377 = vmatprep.mubr.f32.mxu0 %v167
    %378 = vmatmul.mubr.f32.gmra.mrb[0].mxu0 %v90
    %v379 = vpop.f32.mrb[0].mxu0
    %v380 = vadd.f32 %v275, %v379
    %v381 = vpop.f32.mrb[0].mxu0
    %382 = vdwg.mxu0
    %v383 = vadd.f32 %v345, %v350
    %v384 = vadd.f32 %v383, %v355
    %v385 = vadd.f32 %v384, %v360
    %v386 = vadd.f32 %v385, %v365
    %v387 = vadd.f32 %v386, %v370
    %v388 = vadd.f32 %v387, %v375
    %v389 = vadd.f32 %v388, %v380
    %v390 = vrot.slane %v389, 4
    %v391 = vadd.f32 %v389, %v390
    %v392 = vrot.slane %v391, 2
    %v393 = vadd.f32 %v391, %v392
    %v394 = vrot.slane %v393, 1
    %v395 = vadd.f32 %v393, %v394
    %v396 = vrcp.pop 64.0
    %v397 = vmul.f32 %v395, %v396
    %v398 = vsub.f32 %v345, %v397
    %v399 = vsub.f32 %v350, %v397
    %v400 = vsub.f32 %v355, %v397
    %v401 = vsub.f32 %v360, %v397
    %v402 = vsub.f32 %v365, %v397
    %v403 = vsub.f32 %v370, %v397
    %v404 = vsub.f32 %v375, %v397
    %v405 = vsub.f32 %v380, %v397
    %v406 = vmul.f32 %v398, %v398
    %v407 = vmul.f32 %v399, %v399
    %v408 = vmul.f32 %v400, %v400
    %v409 = vmul.f32 %v401, %v401
    %v410 = vmul.f32 %v402, %v402
    %v411 = vmul.f32 %v403, %v403
    %v412 = vmul.f32 %v404, %v404
    %v413 = vmul.f32 %v405, %v405
    %v414 = vadd.f32 %v406, %v407
    %v415 = vadd.f32 %v414, %v408
    %v416 = vadd.f32 %v415, %v409
    %v417 = vadd.f32 %v416, %v410
    %v418 = vadd.f32 %v417, %v411
    %v419 = vadd.f32 %v418, %v412
    %v420 = vadd.f32 %v419, %v413
    %v421 = vrot.slane %v420, 4
    %v422 = vadd.f32 %v420, %v421
    %v423 = vrot.slane %v422, 2
    %v424 = vadd.f32 %v422, %v423
    %v425 = vrot.slane %v424, 1
    %v426 = vadd.f32 %v424, %v425
    %v427 = vmul.f32 %v426, %v396
    %v428 = vld [vmem:[%s2] sm:$0x1]
    %v429 = vadd.f32 %v427, 1e-05
    %v430 = vrsqrt.pop %v429
    %v431 = vmul.f32 %v428, %v430
    %v432 = vld [vmem:[%s3] sm:$0x1]
    %v433 = vmul.f32 %v397, %v431
    %v434 = vsub.f32 %v432, %v433
    %v436 = vlaneseq
    %v437 = vshrl.u32 %v436, 7
    %v438 = vsub.s32 0, %v437
    %v439 = vrot.slane %v431, %v438
    %v441 = vmul.f32 %v345, %v439
    %v442 = vmul.f32 %v350, %v439
    %v443 = vmul.f32 %v355, %v439
    %v444 = vmul.f32 %v360, %v439
    %v445 = vmul.f32 %v365, %v439
    %v446 = vmul.f32 %v370, %v439
    %v447 = vmul.f32 %v375, %v439
    %v448 = vmul.f32 %v380, %v439
    %v450 = vlaneseq
    %v451 = vshrl.u32 %v450, 7
    %v452 = vsub.s32 0, %v451
    %v453 = vrot.slane %v434, %v452
    %v455 = vadd.f32 %v441, %v453
    %v456 = vadd.f32 %v442, %v453
    %v457 = vadd.f32 %v443, %v453
    %v458 = vadd.f32 %v444, %v453
    %v459 = vadd.f32 %v445, %v453
    %v460 = vadd.f32 %v446, %v453
    %v461 = vadd.f32 %v447, %v453
    %v462 = vadd.f32 %v448, %v453
    %v463 = vsub.f32 0.0, %v455
    %v464 = vsub.f32 0.0, %v456
    %v465 = vsub.f32 0.0, %v457
    %v466 = vsub.f32 0.0, %v458
    %v467 = vsub.f32 0.0, %v459
    %v468 = vsub.f32 0.0, %v460
    %v469 = vsub.f32 0.0, %v461
    %v470 = vsub.f32 0.0, %v462
    %v471 = vmul.f32 %v463, 1.442695
    %v472 = vpow.pop %v471
    %v473 = vmul.f32 %v464, 1.442695
    %v474 = vpow.pop %v473
    %v475 = vmul.f32 %v465, 1.442695
    %v476 = vpow.pop %v475
    %v477 = vmul.f32 %v466, 1.442695
    %v478 = vpow.pop %v477
    %v479 = vmul.f32 %v467, 1.442695
    %v480 = vpow.pop %v479
    %v481 = vmul.f32 %v468, 1.442695
    %v482 = vpow.pop %v481
    %v483 = vmul.f32 %v469, 1.442695
    %v484 = vpow.pop %v483
    %v485 = vmul.f32 %v470, 1.442695
    %v486 = vpow.pop %v485
    %v487 = vadd.f32 %v472, 1.0
    %v488 = vadd.f32 %v474, 1.0
    %v489 = vadd.f32 %v476, 1.0
    %v490 = vadd.f32 %v478, 1.0
    %v491 = vadd.f32 %v480, 1.0
    %v492 = vadd.f32 %v482, 1.0
    %v493 = vadd.f32 %v484, 1.0
    %v494 = vadd.f32 %v486, 1.0
    %v495 = vrcp.pop %v487
    %v496 = vmul.f32 1.0, %v495
    %v497 = vrcp.pop %v488
    %v498 = vmul.f32 1.0, %v497
    %v499 = vrcp.pop %v489
    %v500 = vmul.f32 1.0, %v499
    %v501 = vrcp.pop %v490
    %v502 = vmul.f32 1.0, %v501
    %v503 = vrcp.pop %v491
    %v504 = vmul.f32 1.0, %v503
    %v505 = vrcp.pop %v492
    %v506 = vmul.f32 1.0, %v505
    %v507 = vrcp.pop %v493
    %v508 = vmul.f32 1.0, %v507
    %v509 = vrcp.pop %v494
    %v510 = vmul.f32 1.0, %v509
    %v511 = vld [vmem:[%s4] sm:$0xff]
    %v512 = vld [vmem:[%s4 + $0x8] sm:$0xff]
    %v513 = vld [vmem:[%s4 + $0x10] sm:$0xff]
    %v514 = vld [vmem:[%s4 + $0x18] sm:$0xff]
    %v515 = vld [vmem:[%s4 + $0x20] sm:$0xff]
    %v516 = vld [vmem:[%s4 + $0x28] sm:$0xff]
    %v517 = vld [vmem:[%s4 + $0x30] sm:$0xff]
    %v518 = vld [vmem:[%s4 + $0x38] sm:$0xff]
    %v519 = vld [vmem:[%s4 + $0x40] sm:$0xff]
    %v520 = vld [vmem:[%s4 + $0x48] sm:$0xff]
    %v521 = vld [vmem:[%s4 + $0x50] sm:$0xff]
    %v522 = vld [vmem:[%s4 + $0x58] sm:$0xff]
    %v523 = vld [vmem:[%s4 + $0x60] sm:$0xff]
    %v524 = vld [vmem:[%s4 + $0x68] sm:$0xff]
    %v525 = vld [vmem:[%s4 + $0x70] sm:$0xff]
    %v526 = vld [vmem:[%s4 + $0x78] sm:$0xff]
    %527 = vmatprep.subr.mxu0 0.0
    %528 = vmatpush1.msra.mxu0 %v511
    %529 = vmatprep.subr.mxu0 0.0
    %530 = vmatpush1.msra.mxu0 %v512
    %531 = vmatprep.subr.mxu0 0.0
    %532 = vmatpush1.msra.mxu0 %v513
    %533 = vmatprep.subr.mxu0 0.0
    %534 = vmatpush1.msra.mxu0 %v514
    %535 = vmatprep.subr.mxu0 0.0
    %536 = vmatpush1.msra.mxu0 %v515
    %537 = vmatprep.subr.mxu0 0.0
    %538 = vmatpush1.msra.mxu0 %v516
    %539 = vmatprep.subr.mxu0 0.0
    %540 = vmatpush1.msra.mxu0 %v517
    %541 = vmatprep.subr.mxu0 0.0
    %542 = vmatpush1.msra.mxu0 %v518
    %543 = vmatprep.subr.mxu0 0.0
    %544 = vmatpush1.msra.mxu0 %v519
    %545 = vmatprep.subr.mxu0 0.0
    %546 = vmatpush1.msra.mxu0 %v520
    %547 = vmatprep.subr.mxu0 0.0
    %548 = vmatpush1.msra.mxu0 %v521
    %549 = vmatprep.subr.mxu0 0.0
    %550 = vmatpush1.msra.mxu0 %v522
    %551 = vmatprep.subr.mxu0 0.0
    %552 = vmatpush1.msra.mxu0 %v523
    %553 = vmatprep.subr.mxu0 0.0
    %554 = vmatpush1.msra.mxu0 %v524
    %555 = vmatprep.subr.mxu0 0.0
    %556 = vmatpush1.msra.mxu0 %v525
    %557 = vmatprep.subr.mxu0 0.0
    %558 = vmatpush1.msra.mxu0 %v526
    %559 = vmatprep.subr.mxu0 0.0
    %560 = vmatpush1.msra.mxu0 0.0
    %561 = vmatprep.subr.mxu0 0.0
    %562 = vmatpush1.msra.mxu0 0.0
    %563 = vmatprep.subr.mxu0 0.0
    %564 = vmatpush1.msra.mxu0 0.0
    %565 = vmatprep.subr.mxu0 0.0
    %566 = vmatpush1.msra.mxu0 0.0
    %567 = vmatprep.subr.mxu0 0.0
    %568 = vmatpush1.msra.mxu0 0.0
    %569 = vmatprep.subr.mxu0 0.0
    %570 = vmatpush1.msra.mxu0 0.0
    %571 = vmatprep.subr.mxu0 0.0
    %572 = vmatpush1.msra.mxu0 0.0
    %573 = vmatprep.subr.mxu0 0.0
    %574 = vmatpush1.msra.mxu0 0.0
    %575 = vmatprep.subr.mxu0 0.0
    %576 = vmatpush1.msra.mxu0 0.0
    %577 = vmatprep.subr.mxu0 0.0
    %578 = vmatpush1.msra.mxu0 0.0
    %579 = vmatprep.subr.mxu0 0.0
    %580 = vmatpush1.msra.mxu0 0.0
    %581 = vmatprep.subr.mxu0 0.0
    %582 = vmatpush1.msra.mxu0 0.0
    %583 = vmatprep.subr.mxu0 0.0
    %584 = vmatpush1.msra.mxu0 0.0
    %585 = vmatprep.subr.mxu0 0.0
    %586 = vmatpush1.msra.mxu0 0.0
    %587 = vmatprep.subr.mxu0 0.0
    %588 = vmatpush1.msra.mxu0 0.0
    %589 = vmatprep.subr.mxu0 0.0
    %590 = vmatpush1.msra.mxu0 0.0
    %591 = vmatprep.mubr.f32.mxu0 0.0
    %592 = vmatmul.mubr.f32.gmra.mrb[0].mxu0 %v496
    %v593 = vpop.f32.mrb[0].mxu0
    %v594 = vadd.f32 0.0, %v593
    %v595 = vpop.f32.mrb[0].mxu0
    %596 = vmatprep.mubr.f32.mxu0 0.0
    %597 = vmatmul.mubr.f32.gmra.mrb[0].mxu0 %v498
    %v598 = vpop.f32.mrb[0].mxu0
    %v599 = vadd.f32 0.0, %v598
    %v600 = vpop.f32.mrb[0].mxu0
    %601 = vmatprep.mubr.f32.mxu0 0.0
    %602 = vmatmul.mubr.f32.gmra.mrb[0].mxu0 %v500
    %v603 = vpop.f32.mrb[0].mxu0
    %v604 = vadd.f32 0.0, %v603
    %v605 = vpop.f32.mrb[0].mxu0
    %606 = vmatprep.mubr.f32.mxu0 0.0
    %607 = vmatmul.mubr.f32.gmra.mrb[0].mxu0 %v502
    %v608 = vpop.f32.mrb[0].mxu0
    %v609 = vadd.f32 0.0, %v608
    %v610 = vpop.f32.mrb[0].mxu0
    %611 = vmatprep.mubr.f32.mxu0 0.0
    %612 = vmatmul.mubr.f32.gmra.mrb[0].mxu0 %v504
    %v613 = vpop.f32.mrb[0].mxu0
    %v614 = vadd.f32 0.0, %v613
    %v615 = vpop.f32.mrb[0].mxu0
    %616 = vmatprep.mubr.f32.mxu0 0.0
    %617 = vmatmul.mubr.f32.gmra.mrb[0].mxu0 %v506
    %v618 = vpop.f32.mrb[0].mxu0
    %v619 = vadd.f32 0.0, %v618
    %v620 = vpop.f32.mrb[0].mxu0
    %621 = vmatprep.mubr.f32.mxu0 0.0
    %622 = vmatmul.mubr.f32.gmra.mrb[0].mxu0 %v508
    %v623 = vpop.f32.mrb[0].mxu0
    %v624 = vadd.f32 0.0, %v623
    %v625 = vpop.f32.mrb[0].mxu0
    %626 = vmatprep.mubr.f32.mxu0 0.0
    %627 = vmatmul.mubr.f32.gmra.mrb[0].mxu0 %v510
    %v628 = vpop.f32.mrb[0].mxu0
    %v629 = vadd.f32 0.0, %v628
    %v630 = vpop.f32.mrb[0].mxu0
    %631 = vdwg.mxu0
    %v632 = vadd.f32 %v594, %v599
    %v633 = vadd.f32 %v632, %v604
    %v634 = vadd.f32 %v633, %v609
    %v635 = vadd.f32 %v634, %v614
    %v636 = vadd.f32 %v635, %v619
    %v637 = vadd.f32 %v636, %v624
    %v638 = vadd.f32 %v637, %v629
    %v639 = vrot.slane %v638, 4
    %v640 = vadd.f32 %v638, %v639
    %v641 = vrot.slane %v640, 2
    %v642 = vadd.f32 %v640, %v641
    %v643 = vrot.slane %v642, 1
    %v644 = vadd.f32 %v642, %v643
    %v645 = vmul.f32 %v644, %v396
    %v646 = vsub.f32 %v594, %v645
    %v647 = vsub.f32 %v599, %v645
    %v648 = vsub.f32 %v604, %v645
    %v649 = vsub.f32 %v609, %v645
    %v650 = vsub.f32 %v614, %v645
    %v651 = vsub.f32 %v619, %v645
    %v652 = vsub.f32 %v624, %v645
    %v653 = vsub.f32 %v629, %v645
    %v654 = vmul.f32 %v646, %v646
    %v655 = vmul.f32 %v647, %v647
    %v656 = vmul.f32 %v648, %v648
    %v657 = vmul.f32 %v649, %v649
    %v658 = vmul.f32 %v650, %v650
    %v659 = vmul.f32 %v651, %v651
    %v660 = vmul.f32 %v652, %v652
    %v661 = vmul.f32 %v653, %v653
    %v662 = vadd.f32 %v654, %v655
    %v663 = vadd.f32 %v662, %v656
    %v664 = vadd.f32 %v663, %v657
    %v665 = vadd.f32 %v664, %v658
    %v666 = vadd.f32 %v665, %v659
    %v667 = vadd.f32 %v666, %v660
    %v668 = vadd.f32 %v667, %v661
    %v669 = vrot.slane %v668, 4
    %v670 = vadd.f32 %v668, %v669
    %v671 = vrot.slane %v670, 2
    %v672 = vadd.f32 %v670, %v671
    %v673 = vrot.slane %v672, 1
    %v674 = vadd.f32 %v672, %v673
    %v675 = vmul.f32 %v674, %v396
    %v676 = vld [vmem:[%s5] sm:$0x1]
    %v677 = vadd.f32 %v675, 1e-05
    %v678 = vrsqrt.pop %v677
    %v679 = vmul.f32 %v676, %v678
    %v680 = vld [vmem:[%s6] sm:$0x1]
    %v681 = vmul.f32 %v645, %v679
    %v682 = vsub.f32 %v680, %v681
    %v684 = vlaneseq
    %v685 = vshrl.u32 %v684, 7
    %v686 = vsub.s32 0, %v685
    %v687 = vrot.slane %v679, %v686
    %v689 = vmul.f32 %v594, %v687
    %v690 = vmul.f32 %v599, %v687
    %v691 = vmul.f32 %v604, %v687
    %v692 = vmul.f32 %v609, %v687
    %v693 = vmul.f32 %v614, %v687
    %v694 = vmul.f32 %v619, %v687
    %v695 = vmul.f32 %v624, %v687
    %v696 = vmul.f32 %v629, %v687
    %v698 = vlaneseq
    %v699 = vshrl.u32 %v698, 7
    %v700 = vsub.s32 0, %v699
    %v701 = vrot.slane %v682, %v700
    %v703 = vadd.f32 %v689, %v701
    %v704 = vadd.f32 %v690, %v701
    %v705 = vadd.f32 %v691, %v701
    %v706 = vadd.f32 %v692, %v701
    %v707 = vadd.f32 %v693, %v701
    %v708 = vadd.f32 %v694, %v701
    %v709 = vadd.f32 %v695, %v701
    %v710 = vadd.f32 %v696, %v701
    %v711 = vsub.f32 0.0, %v703
    %v712 = vsub.f32 0.0, %v704
    %v713 = vsub.f32 0.0, %v705
    %v714 = vsub.f32 0.0, %v706
    %v715 = vsub.f32 0.0, %v707
    %v716 = vsub.f32 0.0, %v708
    %v717 = vsub.f32 0.0, %v709
    %v718 = vsub.f32 0.0, %v710
    %v719 = vmul.f32 %v711, 1.442695
    %v720 = vpow.pop %v719
    %v721 = vmul.f32 %v712, 1.442695
    %v722 = vpow.pop %v721
    %v723 = vmul.f32 %v713, 1.442695
    %v724 = vpow.pop %v723
    %v725 = vmul.f32 %v714, 1.442695
    %v726 = vpow.pop %v725
    %v727 = vmul.f32 %v715, 1.442695
    %v728 = vpow.pop %v727
    %v729 = vmul.f32 %v716, 1.442695
    %v730 = vpow.pop %v729
    %v731 = vmul.f32 %v717, 1.442695
    %v732 = vpow.pop %v731
    %v733 = vmul.f32 %v718, 1.442695
    %v734 = vpow.pop %v733
    %v735 = vadd.f32 %v720, 1.0
    %v736 = vadd.f32 %v722, 1.0
    %v737 = vadd.f32 %v724, 1.0
    %v738 = vadd.f32 %v726, 1.0
    %v739 = vadd.f32 %v728, 1.0
    %v740 = vadd.f32 %v730, 1.0
    %v741 = vadd.f32 %v732, 1.0
    %v742 = vadd.f32 %v734, 1.0
    %v743 = vrcp.pop %v735
    %v744 = vmul.f32 1.0, %v743
    %v745 = vrcp.pop %v736
    %v746 = vmul.f32 1.0, %v745
    %v747 = vrcp.pop %v737
    %v748 = vmul.f32 1.0, %v747
    %v749 = vrcp.pop %v738
    %v750 = vmul.f32 1.0, %v749
    %v751 = vrcp.pop %v739
    %v752 = vmul.f32 1.0, %v751
    %v753 = vrcp.pop %v740
    %v754 = vmul.f32 1.0, %v753
    %v755 = vrcp.pop %v741
    %v756 = vmul.f32 1.0, %v755
    %v757 = vrcp.pop %v742
    %v758 = vmul.f32 1.0, %v757
    %v759 = vld [vmem:[%s7] sm:$0xff]
    %v760 = vld [vmem:[%s7 + $0x8] sm:$0xff]
    %v761 = vld [vmem:[%s7 + $0x10] sm:$0xff]
    %v762 = vld [vmem:[%s7 + $0x18] sm:$0xff]
    %v763 = vld [vmem:[%s7 + $0x20] sm:$0xff]
    %v764 = vld [vmem:[%s7 + $0x28] sm:$0xff]
    %v765 = vld [vmem:[%s7 + $0x30] sm:$0xff]
    %v766 = vld [vmem:[%s7 + $0x38] sm:$0xff]
    %v767 = vld [vmem:[%s7 + $0x40] sm:$0xff]
    %v768 = vld [vmem:[%s7 + $0x48] sm:$0xff]
    %v769 = vld [vmem:[%s7 + $0x50] sm:$0xff]
    %v770 = vld [vmem:[%s7 + $0x58] sm:$0xff]
    %v771 = vld [vmem:[%s7 + $0x60] sm:$0xff]
    %v772 = vld [vmem:[%s7 + $0x68] sm:$0xff]
    %v773 = vld [vmem:[%s7 + $0x70] sm:$0xff]
    %v774 = vld [vmem:[%s7 + $0x78] sm:$0xff]
    %v775 = vld [vmem:[%s8] sm:$0x1]
    %v777 = vlaneseq
    %v778 = vshrl.u32 %v777, 7
    %v779 = vsub.s32 0, %v778
    %v780 = vrot.slane %v775, %v779
    %782 = vmatprep.subr.mxu0 0.0
    %783 = vmatpush1.msra.mxu0 %v759
    %784 = vmatprep.subr.mxu0 0.0
    %785 = vmatpush1.msra.mxu0 %v760
    %786 = vmatprep.subr.mxu0 0.0
    %787 = vmatpush1.msra.mxu0 %v761
    %788 = vmatprep.subr.mxu0 0.0
    %789 = vmatpush1.msra.mxu0 %v762
    %790 = vmatprep.subr.mxu0 0.0
    %791 = vmatpush1.msra.mxu0 %v763
    %792 = vmatprep.subr.mxu0 0.0
    %793 = vmatpush1.msra.mxu0 %v764
    %794 = vmatprep.subr.mxu0 0.0
    %795 = vmatpush1.msra.mxu0 %v765
    %796 = vmatprep.subr.mxu0 0.0
    %797 = vmatpush1.msra.mxu0 %v766
    %798 = vmatprep.subr.mxu0 0.0
    %799 = vmatpush1.msra.mxu0 %v767
    %800 = vmatprep.subr.mxu0 0.0
    %801 = vmatpush1.msra.mxu0 %v768
    %802 = vmatprep.subr.mxu0 0.0
    %803 = vmatpush1.msra.mxu0 %v769
    %804 = vmatprep.subr.mxu0 0.0
    %805 = vmatpush1.msra.mxu0 %v770
    %806 = vmatprep.subr.mxu0 0.0
    %807 = vmatpush1.msra.mxu0 %v771
    %808 = vmatprep.subr.mxu0 0.0
    %809 = vmatpush1.msra.mxu0 %v772
    %810 = vmatprep.subr.mxu0 0.0
    %811 = vmatpush1.msra.mxu0 %v773
    %812 = vmatprep.subr.mxu0 0.0
    %813 = vmatpush1.msra.mxu0 %v774
    %814 = vmatprep.subr.mxu0 0.0
    %815 = vmatpush1.msra.mxu0 0.0
    %816 = vmatprep.subr.mxu0 0.0
    %817 = vmatpush1.msra.mxu0 0.0
    %818 = vmatprep.subr.mxu0 0.0
    %819 = vmatpush1.msra.mxu0 0.0
    %820 = vmatprep.subr.mxu0 0.0
    %821 = vmatpush1.msra.mxu0 0.0
    %822 = vmatprep.subr.mxu0 0.0
    %823 = vmatpush1.msra.mxu0 0.0
    %824 = vmatprep.subr.mxu0 0.0
    %825 = vmatpush1.msra.mxu0 0.0
    %826 = vmatprep.subr.mxu0 0.0
    %827 = vmatpush1.msra.mxu0 0.0
    %828 = vmatprep.subr.mxu0 0.0
    %829 = vmatpush1.msra.mxu0 0.0
    %830 = vmatprep.subr.mxu0 0.0
    %831 = vmatpush1.msra.mxu0 0.0
    %832 = vmatprep.subr.mxu0 0.0
    %833 = vmatpush1.msra.mxu0 0.0
    %834 = vmatprep.subr.mxu0 0.0
    %835 = vmatpush1.msra.mxu0 0.0
    %836 = vmatprep.subr.mxu0 0.0
    %837 = vmatpush1.msra.mxu0 0.0
    %838 = vmatprep.subr.mxu0 0.0
    %839 = vmatpush1.msra.mxu0 0.0
    %840 = vmatprep.subr.mxu0 0.0
    %841 = vmatpush1.msra.mxu0 0.0
    %842 = vmatprep.subr.mxu0 0.0
    %843 = vmatpush1.msra.mxu0 0.0
    %844 = vmatprep.subr.mxu0 0.0
    %845 = vmatpush1.msra.mxu0 0.0
    %846 = vmatprep.mubr.f32.mxu0 0.0
    %847 = vmatmul.mubr.f32.gmra.mrb[0].mxu0 %v744
    %v848 = vpop.f32.mrb[0].mxu0
    %v849 = vadd.f32 %v780, %v848
    %v850 = vpop.f32.mrb[0].mxu0
    %851 = vmatprep.mubr.f32.mxu0 0.0
    %852 = vmatmul.mubr.f32.gmra.mrb[0].mxu0 %v746
    %v853 = vpop.f32.mrb[0].mxu0
    %v854 = vadd.f32 %v780, %v853
    %v855 = vpop.f32.mrb[0].mxu0
    %856 = vmatprep.mubr.f32.mxu0 0.0
    %857 = vmatmul.mubr.f32.gmra.mrb[0].mxu0 %v748
    %v858 = vpop.f32.mrb[0].mxu0
    %v859 = vadd.f32 %v780, %v858
    %v860 = vpop.f32.mrb[0].mxu0
    %861 = vmatprep.mubr.f32.mxu0 0.0
    %862 = vmatmul.mubr.f32.gmra.mrb[0].mxu0 %v750
    %v863 = vpop.f32.mrb[0].mxu0
    %v864 = vadd.f32 %v780, %v863
    %v865 = vpop.f32.mrb[0].mxu0
    %866 = vmatprep.mubr.f32.mxu0 0.0
    %867 = vmatmul.mubr.f32.gmra.mrb[0].mxu0 %v752
    %v868 = vpop.f32.mrb[0].mxu0
    %v869 = vadd.f32 %v780, %v868
    %v870 = vpop.f32.mrb[0].mxu0
    %871 = vmatprep.mubr.f32.mxu0 0.0
    %872 = vmatmul.mubr.f32.gmra.mrb[0].mxu0 %v754
    %v873 = vpop.f32.mrb[0].mxu0
    %v874 = vadd.f32 %v780, %v873
    %v875 = vpop.f32.mrb[0].mxu0
    %876 = vmatprep.mubr.f32.mxu0 0.0
    %877 = vmatmul.mubr.f32.gmra.mrb[0].mxu0 %v756
    %v878 = vpop.f32.mrb[0].mxu0
    %v879 = vadd.f32 %v780, %v878
    %v880 = vpop.f32.mrb[0].mxu0
    %881 = vmatprep.mubr.f32.mxu0 0.0
    %882 = vmatmul.mubr.f32.gmra.mrb[0].mxu0 %v758
    %v883 = vpop.f32.mrb[0].mxu0
    %v884 = vadd.f32 %v780, %v883
    %v885 = vpop.f32.mrb[0].mxu0
    %886 = vdwg.mxu0
    %vm887 = vcmask 64512
    %v888 = vsel %vm887, %v849, -inf
    %889 = vmax.xlane.f32.xlu0 %v888
    %v890 = vpop.xlane.xlu0 %889
    %v891 = vsel %vm887, %v854, -inf
    %892 = vmax.xlane.f32.xlu0 %v891
    %v893 = vpop.xlane.xlu0 %892
    %v894 = vsel %vm887, %v859, -inf
    %895 = vmax.xlane.f32.xlu0 %v894
    %v896 = vpop.xlane.xlu0 %895
    %v897 = vsel %vm887, %v864, -inf
    %898 = vmax.xlane.f32.xlu0 %v897
    %v899 = vpop.xlane.xlu0 %898
    %v900 = vsel %vm887, %v869, -inf
    %901 = vmax.xlane.f32.xlu0 %v900
    %v902 = vpop.xlane.xlu0 %901
    %v903 = vsel %vm887, %v874, -inf
    %904 = vmax.xlane.f32.xlu0 %v903
    %v905 = vpop.xlane.xlu0 %904
    %v906 = vsel %vm887, %v879, -inf
    %907 = vmax.xlane.f32.xlu0 %v906
    %v908 = vpop.xlane.xlu0 %907
    %v909 = vsel %vm887, %v884, -inf
    %910 = vmax.xlane.f32.xlu0 %v909
    %v911 = vpop.xlane.xlu0 %910
    %v912 = vsub.f32 %v849, %v890
    %v913 = vsub.f32 %v854, %v893
    %v914 = vsub.f32 %v859, %v896
    %v915 = vsub.f32 %v864, %v899
    %v916 = vsub.f32 %v869, %v902
    %v917 = vsub.f32 %v874, %v905
    %v918 = vsub.f32 %v879, %v908
    %v919 = vsub.f32 %v884, %v911
    %v920 = vmul.f32 %v912, 1.442695
    %v921 = vpow.pop %v920
    %v922 = vmul.f32 %v913, 1.442695
    %v923 = vpow.pop %v922
    %v924 = vmul.f32 %v914, 1.442695
    %v925 = vpow.pop %v924
    %v926 = vmul.f32 %v915, 1.442695
    %v927 = vpow.pop %v926
    %v928 = vmul.f32 %v916, 1.442695
    %v929 = vpow.pop %v928
    %v930 = vmul.f32 %v917, 1.442695
    %v931 = vpow.pop %v930
    %v932 = vmul.f32 %v918, 1.442695
    %v933 = vpow.pop %v932
    %v934 = vmul.f32 %v919, 1.442695
    %v935 = vpow.pop %v934
    %v936 = vsel %vm887, %v921, 0.0
    %937 = vadd.xlane.f32.xlu0 %v936
    %v938 = vpop.xlane.xlu0 %937
    %v939 = vsel %vm887, %v923, 0.0
    %940 = vadd.xlane.f32.xlu0 %v939
    %v941 = vpop.xlane.xlu0 %940
    %v942 = vsel %vm887, %v925, 0.0
    %943 = vadd.xlane.f32.xlu0 %v942
    %v944 = vpop.xlane.xlu0 %943
    %v945 = vsel %vm887, %v927, 0.0
    %946 = vadd.xlane.f32.xlu0 %v945
    %v947 = vpop.xlane.xlu0 %946
    %v948 = vsel %vm887, %v929, 0.0
    %949 = vadd.xlane.f32.xlu0 %v948
    %v950 = vpop.xlane.xlu0 %949
    %v951 = vsel %vm887, %v931, 0.0
    %952 = vadd.xlane.f32.xlu0 %v951
    %v953 = vpop.xlane.xlu0 %952
    %v954 = vsel %vm887, %v933, 0.0
    %955 = vadd.xlane.f32.xlu0 %v954
    %v956 = vpop.xlane.xlu0 %955
    %v957 = vsel %vm887, %v935, 0.0
    %958 = vadd.xlane.f32.xlu0 %v957
    %v959 = vpop.xlane.xlu0 %958
    %v960 = vrcp.pop %v938
    %v961 = vrcp.pop %v941
    %v962 = vrcp.pop %v944
    %v963 = vrcp.pop %v947
    %v964 = vrcp.pop %v950
    %v965 = vrcp.pop %v953
    %v966 = vrcp.pop %v956
    %v967 = vrcp.pop %v959
    %v968 = vmul.f32 %v921, %v960
    %v969 = vmul.f32 %v923, %v961
    %v970 = vmul.f32 %v925, %v962
    %v971 = vmul.f32 %v927, %v963
    %v972 = vmul.f32 %v929, %v964
    %v973 = vmul.f32 %v931, %v965
    %v974 = vmul.f32 %v933, %v966
    %v975 = vmul.f32 %v935, %v967
    %976 = vst.msk [vmem:[%s9] sm:$0xff] %vm887, %v968
    %977 = vst.msk [vmem:[%s9 + $0x8] sm:$0xff] %vm887, %v969
    %978 = vst.msk [vmem:[%s9 + $0x10] sm:$0xff] %vm887, %v970
    %979 = vst.msk [vmem:[%s9 + $0x18] sm:$0xff] %vm887, %v971
    %980 = vst.msk [vmem:[%s9 + $0x20] sm:$0xff] %vm887, %v972
    %981 = vst.msk [vmem:[%s9 + $0x28] sm:$0xff] %vm887, %v973
    %982 = vst.msk [vmem:[%s9 + $0x30] sm:$0xff] %vm887, %v974
    %983 = vst.msk [vmem:[%s9 + $0x38] sm:$0xff] %vm887, %v975
    // Predicated region
    $region46: #{numerfical_forward.1} parent=1 // pred_check
      _
    $region47: #{numerfical_forward.1} parent=1 // pred_check_branch
      %985 = sbr.rel (0) target = $region49
    $region48: #{numerfical_forward.1} parent=1 // pred_region
      _
    $region49: #{numerfical_forward.1} parent=1 // pred_fallthru
      _
    // Predicated region
    $region50: #{numerfical_forward.1} parent=1 // pred_check
      _
    $region51: #{numerfical_forward.1} parent=1 // pred_check_branch
      %987 = sbr.rel (0) target = $region53
    $region52: #{numerfical_forward.1} parent=1 // pred_region
      _
    $region53: #{numerfical_forward.1} parent=1 // pred_fallthru
      _
    %988 = vsyncpa [#allocation3], 1
    %989 = vsyncpa [#allocation5], 1

</llo_original>
